<compile_context>
chip_gen: v5e
topology: v5e:2x2
jax: 0.10.0
libtpu: 0.0.40
codegen_flags: <defaults>
</compile_context>

<pallas_src>
import jax
import jax.numpy as jnp
import numpy as np
from jax import lax
from jax.experimental import pallas as pl
from jax.experimental.pallas import tpu as pltpu


# ----------------------------------------------------------------------------
# Kernel
# ----------------------------------------------------------------------------
def lstm_kernel(x_ref, wih_ref, whh_ref, b_ref, fcw_ref, fcb_ref, out_ref):
    """Whole-sequence LSTM + final Linear in one kernel invocation.

    x_ref  : (B*T, D)   batch_first input flattened (row index = b*T + t)
    wih_ref: (D, 4*Hp)  fused input->hidden weights, gates (i,f,g,o) on lanes
    whh_ref: (Hp, 4*Hp) fused hidden->hidden weights
    b_ref  : (1, 4*Hp)  combined bias (b_ih + b_hh), zero in padded lanes
    fcw_ref: (Hp, O)    final linear weight (transposed, zero-padded rows)
    fcb_ref: (1, O)     final linear bias
    out_ref: (B, O)     fc(h_T)
    """
    BT, _ = x_ref.shape
    Hp = whh_ref.shape[0]
    G = whh_ref.shape[1]          # 4 * Hp
    B = out_ref.shape[0]
    T = BT // B

    def sigmoid(z):
        # tanh goes to the EUP slot; avoids a VALU divide on the recurrent path.
        return 0.5 * jnp.tanh(0.5 * z) + 0.5

    # ---- hoisted input projection: one big matmul + bias, outside the loop ---
    xw = (
        jnp.dot(x_ref[...], wih_ref[...], preferred_element_type=jnp.float32)
        + b_ref[...]
    )                              # (B*T, 4Hp)
    xw = xw.reshape(B, T, G)       # sublane-aligned split of the leading dim

    whh = whh_ref[...]             # keep resident in vregs across the loop
    h = jnp.zeros((B, Hp), jnp.float32)
    c = jnp.zeros((B, Hp), jnp.float32)

    # ---- serial recurrence: one fused (B,Hp)@(Hp,4Hp) matmul per step --------
    # T is small and static -> fully unrolled, all slices static.
    for t in range(T):
        z = xw[:, t, :] + jnp.dot(h, whh, preferred_element_type=jnp.float32)
        i = sigmoid(z[:, 0 * Hp:1 * Hp])
        f = sigmoid(z[:, 1 * Hp:2 * Hp])
        g = jnp.tanh(z[:, 2 * Hp:3 * Hp])
        o = sigmoid(z[:, 3 * Hp:4 * Hp])
        c = f * c + i * g
        h = o * jnp.tanh(c)

    # ---- final linear head on the last hidden state --------------------------
    out_ref[...] = (
        jnp.dot(h, fcw_ref[...], preferred_element_type=jnp.float32)
        + fcb_ref[...]
    )


# ----------------------------------------------------------------------------
# Wrapper
# ----------------------------------------------------------------------------
def lstm_forward(x, packed_params):
    """x: (B, T, D) float32, batch_first like the PyTorch module."""
    wih, whh, b, fcw, fcb = packed_params
    B, T, D = x.shape
    O = fcw.shape[1]

    # Free flatten (no transpose): row b*T + t of x2d is x[b, t].
    x2d = x.reshape(B * T, D)

    vmem = pl.BlockSpec(memory_space=pltpu.MemorySpace.VMEM)
    return pl.pallas_call(
        lstm_kernel,
        out_shape=jax.ShapeDtypeStruct((B, O), jnp.float32),
        in_specs=[vmem] * 6,
        out_specs=vmem,
    )(x2d, wih, whh, b, fcw, fcb)


# ----------------------------------------------------------------------------
# Parameters
# ----------------------------------------------------------------------------
def init_torch_params(key, input_dim, hidden_dim, output_dim):
    """PyTorch-shaped parameters (nn.LSTM / nn.Linear), uniform(-k, k)."""
    k = 1.0 / np.sqrt(hidden_dim)
    keys = jax.random.split(key, 6)
    w_ih = jax.random.uniform(keys[0], (4 * hidden_dim, input_dim), jnp.float32, -k, k)
    w_hh = jax.random.uniform(keys[1], (4 * hidden_dim, hidden_dim), jnp.float32, -k, k)
    b_ih = jax.random.uniform(keys[2], (4 * hidden_dim,), jnp.float32, -k, k)
    b_hh = jax.random.uniform(keys[3], (4 * hidden_dim,), jnp.float32, -k, k)
    fc_w = jax.random.uniform(keys[4], (output_dim, hidden_dim), jnp.float32, -k, k)
    fc_b = jax.random.uniform(keys[5], (output_dim,), jnp.float32, -k, k)
    return (w_ih, w_hh, b_ih, b_hh, fc_w, fc_b)


def pack_params(raw, input_dim, hidden_dim, output_dim):
    """Kernel-friendly fused/padded layout.

    Each gate is zero-padded from H to Hp (multiple of 64, so 4Hp is a multiple
    of 128).  Padded gate pre-activations are exactly 0, so the padded h/c
    lanes stay 0 for all t and the zero-padded fc rows make the output exact.
    On v6e/v7x these weights can be cast to bfloat16 for inference.
    """
    w_ih, w_hh, b_ih, b_hh, fc_w, fc_b = raw
    H = hidden_dim
    Hp = int(-(-H // 64) * 64)               # 48 -> 64; 4Hp = 256

    wih_g = w_ih.reshape(4, H, input_dim)    # (4, H, D), gate order i,f,g,o
    whh_g = w_hh.reshape(4, H, H)            # (4, H, H)
    b_g = (b_ih + b_hh).reshape(4, H)        # (4, H)

    wih = jnp.zeros((input_dim, 4 * Hp), jnp.float32)
    whh = jnp.zeros((Hp, 4 * Hp), jnp.float32)
    b = jnp.zeros((1, 4 * Hp), jnp.float32)
    for g in range(4):
        wih = wih.at[:, g * Hp:g * Hp + H].set(wih_g[g].T)
        whh = whh.at[:H, g * Hp:g * Hp + H].set(whh_g[g].T)
        b = b.at[0, g * Hp:g * Hp + H].set(b_g[g])

    fcw = jnp.zeros((Hp, output_dim), jnp.float32).at[:H, :].set(fc_w.T)
    fcb = fc_b.reshape(1, output_dim)
    return (wih, whh, b, fcw, fcb)


# ----------------------------------------------------------------------------
# Pure-JAX reference (uses the raw PyTorch-shaped weights)
# ----------------------------------------------------------------------------
def lstm_forward_ref(x, raw):
    w_ih, w_hh, b_ih, b_hh, fc_w, fc_b = raw
    B, T, D = x.shape
    H = w_hh.shape[1]

    def step(carry, x_t):
        h, c = carry
        z = x_t @ w_ih.T + h @ w_hh.T + b_ih + b_hh          # (B, 4H), i,f,g,o
        i, f, g, o = jnp.split(z, 4, axis=-1)
        i = jax.nn.sigmoid(i)
        f = jax.nn.sigmoid(f)
        g = jnp.tanh(g)
        o = jax.nn.sigmoid(o)
        c_new = f * c + i * g
        h_new = o * jnp.tanh(c_new)
        return (h_new, c_new), None

    h0 = jnp.zeros((B, H), jnp.float32)
    c0 = jnp.zeros((B, H), jnp.float32)
    (h_T, _), _ = lax.scan(step, (h0, c0), jnp.transpose(x, (1, 0, 2)))
    return h_T @ fc_w.T + fc_b


# ----------------------------------------------------------------------------
# Main
# ----------------------------------------------------------------------------
if __name__ == "__main__":
    # Small shapes consistent with the module: x is (batch, seq, input_dim),
    # hidden_dim = 48 as in the original script, output_dim = 1 (price).
    batch, seq, input_dim, hidden_dim, output_dim = 2, 8, 4, 48, 1

    key = jax.random.PRNGKey(0)
    kx, kp = jax.random.split(key)
    x = jax.random.normal(kx, (batch, seq, input_dim), dtype=jnp.float32)

    raw = init_torch_params(kp, input_dim, hidden_dim, output_dim)
    packed = pack_params(raw, input_dim, hidden_dim, output_dim)

    out = lstm_forward(x, packed)
    out = jax.block_until_ready(out)

    ref = jax.block_until_ready(lstm_forward_ref(x, raw))
    np.testing.assert_allclose(np.asarray(out), np.asarray(ref), rtol=1e-4, atol=1e-5)

    print("KERNEL_OK")
</pallas_src>

<mosaic_0001>
module attributes {stable_mosaic.version = 11 : i64} {
  func.func @lstm_kernel(%arg0: memref<16x4xf32, #tpu.memory_space<vmem>>, %arg1: memref<4x256xf32, #tpu.memory_space<vmem>>, %arg2: memref<64x256xf32, #tpu.memory_space<vmem>>, %arg3: memref<1x256xf32, #tpu.memory_space<vmem>>, %arg4: memref<64x1xf32, #tpu.memory_space<vmem>>, %arg5: memref<1x1xf32, #tpu.memory_space<vmem>>, %arg6: memref<2x1xf32, #tpu.memory_space<vmem>>) attributes {dimension_semantics = [], scalar_prefetch = 0 : i64, scratch_operands = 0 : i64, tpu.core_type = #tpu.core_type<tc>} {
    %c0 = arith.constant 0 : index
    %c0_0 = arith.constant 0 : index
    %0 = vector.load %arg0[%c0, %c0_0] : memref<16x4xf32, #tpu.memory_space<vmem>>, vector<16x4xf32>
    %c0_1 = arith.constant 0 : index
    %c0_2 = arith.constant 0 : index
    %1 = vector.load %arg1[%c0_1, %c0_2] : memref<4x256xf32, #tpu.memory_space<vmem>>, vector<4x256xf32>
    %cst = arith.constant dense<0.000000e+00> : vector<16x256xf32>
    %2 = tpu.matmul %0, %1, %cst {dimension_numbers = #tpu.dot_dimension_numbers<[1], [0], [0], [1], [0, 0, 1, 1], [], []>} : vector<16x4xf32>, vector<4x256xf32>, vector<16x256xf32> -> vector<16x256xf32>
    %c0_3 = arith.constant 0 : index
    %c0_4 = arith.constant 0 : index
    %3 = vector.load %arg3[%c0_3, %c0_4] : memref<1x256xf32, #tpu.memory_space<vmem>>, vector<1x256xf32>
    %4 = vector.broadcast %3 : vector<1x256xf32> to vector<16x256xf32>
    %5 = arith.addf %2, %4 : vector<16x256xf32>
    %6 = vector.shape_cast %5 : vector<16x256xf32> to vector<2x8x256xf32>
    %c0_5 = arith.constant 0 : index
    %c0_6 = arith.constant 0 : index
    %7 = vector.load %arg2[%c0_5, %c0_6] : memref<64x256xf32, #tpu.memory_space<vmem>>, vector<64x256xf32>
    %cst_7 = arith.constant 0.000000e+00 : f32
    %8 = vector.broadcast %cst_7 : f32 to vector<2x64xf32>
    %cst_8 = arith.constant 0.000000e+00 : f32
    %9 = vector.broadcast %cst_8 : f32 to vector<2x64xf32>
    %10 = vector.extract_strided_slice %6 {offsets = [0, 0, 0], sizes = [2, 1, 256], strides = [1, 1, 1]} : vector<2x8x256xf32> to vector<2x1x256xf32>
    %11 = vector.shape_cast %10 : vector<2x1x256xf32> to vector<2x256xf32>
    %cst_9 = arith.constant dense<0.000000e+00> : vector<2x256xf32>
    %12 = tpu.matmul %8, %7, %cst_9 {dimension_numbers = #tpu.dot_dimension_numbers<[1], [0], [0], [1], [0, 0, 1, 1], [], []>} : vector<2x64xf32>, vector<64x256xf32>, vector<2x256xf32> -> vector<2x256xf32>
    %13 = arith.addf %11, %12 : vector<2x256xf32>
    %14 = vector.extract_strided_slice %13 {offsets = [0, 0], sizes = [2, 64], strides = [1, 1]} : vector<2x256xf32> to vector<2x64xf32>
    %cst_10 = arith.constant 5.000000e-01 : f32
    %15 = vector.broadcast %cst_10 : f32 to vector<2x64xf32>
    %16 = arith.mulf %15, %14 : vector<2x64xf32>
    %17 = math.tanh %16 : vector<2x64xf32>
    %cst_11 = arith.constant 5.000000e-01 : f32
    %18 = vector.broadcast %cst_11 : f32 to vector<2x64xf32>
    %19 = arith.mulf %18, %17 : vector<2x64xf32>
    %cst_12 = arith.constant 5.000000e-01 : f32
    %20 = vector.broadcast %cst_12 : f32 to vector<2x64xf32>
    %21 = arith.addf %19, %20 : vector<2x64xf32>
    %22 = vector.extract_strided_slice %13 {offsets = [0, 64], sizes = [2, 64], strides = [1, 1]} : vector<2x256xf32> to vector<2x64xf32>
    %cst_13 = arith.constant 5.000000e-01 : f32
    %23 = vector.broadcast %cst_13 : f32 to vector<2x64xf32>
    %24 = arith.mulf %23, %22 : vector<2x64xf32>
    %25 = math.tanh %24 : vector<2x64xf32>
    %cst_14 = arith.constant 5.000000e-01 : f32
    %26 = vector.broadcast %cst_14 : f32 to vector<2x64xf32>
    %27 = arith.mulf %26, %25 : vector<2x64xf32>
    %cst_15 = arith.constant 5.000000e-01 : f32
    %28 = vector.broadcast %cst_15 : f32 to vector<2x64xf32>
    %29 = arith.addf %27, %28 : vector<2x64xf32>
    %30 = vector.extract_strided_slice %13 {offsets = [0, 128], sizes = [2, 64], strides = [1, 1]} : vector<2x256xf32> to vector<2x64xf32>
    %31 = math.tanh %30 : vector<2x64xf32>
    %32 = vector.extract_strided_slice %13 {offsets = [0, 192], sizes = [2, 64], strides = [1, 1]} : vector<2x256xf32> to vector<2x64xf32>
    %cst_16 = arith.constant 5.000000e-01 : f32
    %33 = vector.broadcast %cst_16 : f32 to vector<2x64xf32>
    %34 = arith.mulf %33, %32 : vector<2x64xf32>
    %35 = math.tanh %34 : vector<2x64xf32>
    %cst_17 = arith.constant 5.000000e-01 : f32
    %36 = vector.broadcast %cst_17 : f32 to vector<2x64xf32>
    %37 = arith.mulf %36, %35 : vector<2x64xf32>
    %cst_18 = arith.constant 5.000000e-01 : f32
    %38 = vector.broadcast %cst_18 : f32 to vector<2x64xf32>
    %39 = arith.addf %37, %38 : vector<2x64xf32>
    %40 = arith.mulf %29, %9 : vector<2x64xf32>
    %41 = arith.mulf %21, %31 : vector<2x64xf32>
    %42 = arith.addf %40, %41 : vector<2x64xf32>
    %43 = math.tanh %42 : vector<2x64xf32>
    %44 = arith.mulf %39, %43 : vector<2x64xf32>
    %45 = vector.extract_strided_slice %6 {offsets = [0, 1, 0], sizes = [2, 1, 256], strides = [1, 1, 1]} : vector<2x8x256xf32> to vector<2x1x256xf32>
    %46 = vector.shape_cast %45 : vector<2x1x256xf32> to vector<2x256xf32>
    %cst_19 = arith.constant dense<0.000000e+00> : vector<2x256xf32>
    %47 = tpu.matmul %44, %7, %cst_19 {dimension_numbers = #tpu.dot_dimension_numbers<[1], [0], [0], [1], [0, 0, 1, 1], [], []>} : vector<2x64xf32>, vector<64x256xf32>, vector<2x256xf32> -> vector<2x256xf32>
    %48 = arith.addf %46, %47 : vector<2x256xf32>
    %49 = vector.extract_strided_slice %48 {offsets = [0, 0], sizes = [2, 64], strides = [1, 1]} : vector<2x256xf32> to vector<2x64xf32>
    %cst_20 = arith.constant 5.000000e-01 : f32
    %50 = vector.broadcast %cst_20 : f32 to vector<2x64xf32>
    %51 = arith.mulf %50, %49 : vector<2x64xf32>
    %52 = math.tanh %51 : vector<2x64xf32>
    %cst_21 = arith.constant 5.000000e-01 : f32
    %53 = vector.broadcast %cst_21 : f32 to vector<2x64xf32>
    %54 = arith.mulf %53, %52 : vector<2x64xf32>
    %cst_22 = arith.constant 5.000000e-01 : f32
    %55 = vector.broadcast %cst_22 : f32 to vector<2x64xf32>
    %56 = arith.addf %54, %55 : vector<2x64xf32>
    %57 = vector.extract_strided_slice %48 {offsets = [0, 64], sizes = [2, 64], strides = [1, 1]} : vector<2x256xf32> to vector<2x64xf32>
    %cst_23 = arith.constant 5.000000e-01 : f32
    %58 = vector.broadcast %cst_23 : f32 to vector<2x64xf32>
    %59 = arith.mulf %58, %57 : vector<2x64xf32>
    %60 = math.tanh %59 : vector<2x64xf32>
    %cst_24 = arith.constant 5.000000e-01 : f32
    %61 = vector.broadcast %cst_24 : f32 to vector<2x64xf32>
    %62 = arith.mulf %61, %60 : vector<2x64xf32>
    %cst_25 = arith.constant 5.000000e-01 : f32
    %63 = vector.broadcast %cst_25 : f32 to vector<2x64xf32>
    %64 = arith.addf %62, %63 : vector<2x64xf32>
    %65 = vector.extract_strided_slice %48 {offsets = [0, 128], sizes = [2, 64], strides = [1, 1]} : vector<2x256xf32> to vector<2x64xf32>
    %66 = math.tanh %65 : vector<2x64xf32>
    %67 = vector.extract_strided_slice %48 {offsets = [0, 192], sizes = [2, 64], strides = [1, 1]} : vector<2x256xf32> to vector<2x64xf32>
    %cst_26 = arith.constant 5.000000e-01 : f32
    %68 = vector.broadcast %cst_26 : f32 to vector<2x64xf32>
    %69 = arith.mulf %68, %67 : vector<2x64xf32>
    %70 = math.tanh %69 : vector<2x64xf32>
    %cst_27 = arith.constant 5.000000e-01 : f32
    %71 = vector.broadcast %cst_27 : f32 to vector<2x64xf32>
    %72 = arith.mulf %71, %70 : vector<2x64xf32>
    %cst_28 = arith.constant 5.000000e-01 : f32
    %73 = vector.broadcast %cst_28 : f32 to vector<2x64xf32>
    %74 = arith.addf %72, %73 : vector<2x64xf32>
    %75 = arith.mulf %64, %42 : vector<2x64xf32>
    %76 = arith.mulf %56, %66 : vector<2x64xf32>
    %77 = arith.addf %75, %76 : vector<2x64xf32>
    %78 = math.tanh %77 : vector<2x64xf32>
    %79 = arith.mulf %74, %78 : vector<2x64xf32>
    %80 = vector.extract_strided_slice %6 {offsets = [0, 2, 0], sizes = [2, 1, 256], strides = [1, 1, 1]} : vector<2x8x256xf32> to vector<2x1x256xf32>
    %81 = vector.shape_cast %80 : vector<2x1x256xf32> to vector<2x256xf32>
    %cst_29 = arith.constant dense<0.000000e+00> : vector<2x256xf32>
    %82 = tpu.matmul %79, %7, %cst_29 {dimension_numbers = #tpu.dot_dimension_numbers<[1], [0], [0], [1], [0, 0, 1, 1], [], []>} : vector<2x64xf32>, vector<64x256xf32>, vector<2x256xf32> -> vector<2x256xf32>
    %83 = arith.addf %81, %82 : vector<2x256xf32>
    %84 = vector.extract_strided_slice %83 {offsets = [0, 0], sizes = [2, 64], strides = [1, 1]} : vector<2x256xf32> to vector<2x64xf32>
    %cst_30 = arith.constant 5.000000e-01 : f32
    %85 = vector.broadcast %cst_30 : f32 to vector<2x64xf32>
    %86 = arith.mulf %85, %84 : vector<2x64xf32>
    %87 = math.tanh %86 : vector<2x64xf32>
    %cst_31 = arith.constant 5.000000e-01 : f32
    %88 = vector.broadcast %cst_31 : f32 to vector<2x64xf32>
    %89 = arith.mulf %88, %87 : vector<2x64xf32>
    %cst_32 = arith.constant 5.000000e-01 : f32
    %90 = vector.broadcast %cst_32 : f32 to vector<2x64xf32>
    %91 = arith.addf %89, %90 : vector<2x64xf32>
    %92 = vector.extract_strided_slice %83 {offsets = [0, 64], sizes = [2, 64], strides = [1, 1]} : vector<2x256xf32> to vector<2x64xf32>
    %cst_33 = arith.constant 5.000000e-01 : f32
    %93 = vector.broadcast %cst_33 : f32 to vector<2x64xf32>
    %94 = arith.mulf %93, %92 : vector<2x64xf32>
    %95 = math.tanh %94 : vector<2x64xf32>
    %cst_34 = arith.constant 5.000000e-01 : f32
    %96 = vector.broadcast %cst_34 : f32 to vector<2x64xf32>
    %97 = arith.mulf %96, %95 : vector<2x64xf32>
    %cst_35 = arith.constant 5.000000e-01 : f32
    %98 = vector.broadcast %cst_35 : f32 to vector<2x64xf32>
    %99 = arith.addf %97, %98 : vector<2x64xf32>
    %100 = vector.extract_strided_slice %83 {offsets = [0, 128], sizes = [2, 64], strides = [1, 1]} : vector<2x256xf32> to vector<2x64xf32>
    %101 = math.tanh %100 : vector<2x64xf32>
    %102 = vector.extract_strided_slice %83 {offsets = [0, 192], sizes = [2, 64], strides = [1, 1]} : vector<2x256xf32> to vector<2x64xf32>
    %cst_36 = arith.constant 5.000000e-01 : f32
    %103 = vector.broadcast %cst_36 : f32 to vector<2x64xf32>
    %104 = arith.mulf %103, %102 : vector<2x64xf32>
    %105 = math.tanh %104 : vector<2x64xf32>
    %cst_37 = arith.constant 5.000000e-01 : f32
    %106 = vector.broadcast %cst_37 : f32 to vector<2x64xf32>
    %107 = arith.mulf %106, %105 : vector<2x64xf32>
    %cst_38 = arith.constant 5.000000e-01 : f32
    %108 = vector.broadcast %cst_38 : f32 to vector<2x64xf32>
    %109 = arith.addf %107, %108 : vector<2x64xf32>
    %110 = arith.mulf %99, %77 : vector<2x64xf32>
    %111 = arith.mulf %91, %101 : vector<2x64xf32>
    %112 = arith.addf %110, %111 : vector<2x64xf32>
    %113 = math.tanh %112 : vector<2x64xf32>
    %114 = arith.mulf %109, %113 : vector<2x64xf32>
    %115 = vector.extract_strided_slice %6 {offsets = [0, 3, 0], sizes = [2, 1, 256], strides = [1, 1, 1]} : vector<2x8x256xf32> to vector<2x1x256xf32>
    %116 = vector.shape_cast %115 : vector<2x1x256xf32> to vector<2x256xf32>
    %cst_39 = arith.constant dense<0.000000e+00> : vector<2x256xf32>
    %117 = tpu.matmul %114, %7, %cst_39 {dimension_numbers = #tpu.dot_dimension_numbers<[1], [0], [0], [1], [0, 0, 1, 1], [], []>} : vector<2x64xf32>, vector<64x256xf32>, vector<2x256xf32> -> vector<2x256xf32>
    %118 = arith.addf %116, %117 : vector<2x256xf32>
    %119 = vector.extract_strided_slice %118 {offsets = [0, 0], sizes = [2, 64], strides = [1, 1]} : vector<2x256xf32> to vector<2x64xf32>
    %cst_40 = arith.constant 5.000000e-01 : f32
    %120 = vector.broadcast %cst_40 : f32 to vector<2x64xf32>
    %121 = arith.mulf %120, %119 : vector<2x64xf32>
    %122 = math.tanh %121 : vector<2x64xf32>
    %cst_41 = arith.constant 5.000000e-01 : f32
    %123 = vector.broadcast %cst_41 : f32 to vector<2x64xf32>
    %124 = arith.mulf %123, %122 : vector<2x64xf32>
    %cst_42 = arith.constant 5.000000e-01 : f32
    %125 = vector.broadcast %cst_42 : f32 to vector<2x64xf32>
    %126 = arith.addf %124, %125 : vector<2x64xf32>
    %127 = vector.extract_strided_slice %118 {offsets = [0, 64], sizes = [2, 64], strides = [1, 1]} : vector<2x256xf32> to vector<2x64xf32>
    %cst_43 = arith.constant 5.000000e-01 : f32
    %128 = vector.broadcast %cst_43 : f32 to vector<2x64xf32>
    %129 = arith.mulf %128, %127 : vector<2x64xf32>
    %130 = math.tanh %129 : vector<2x64xf32>
    %cst_44 = arith.constant 5.000000e-01 : f32
    %131 = vector.broadcast %cst_44 : f32 to vector<2x64xf32>
    %132 = arith.mulf %131, %130 : vector<2x64xf32>
    %cst_45 = arith.constant 5.000000e-01 : f32
    %133 = vector.broadcast %cst_45 : f32 to vector<2x64xf32>
    %134 = arith.addf %132, %133 : vector<2x64xf32>
    %135 = vector.extract_strided_slice %118 {offsets = [0, 128], sizes = [2, 64], strides = [1, 1]} : vector<2x256xf32> to vector<2x64xf32>
    %136 = math.tanh %135 : vector<2x64xf32>
    %137 = vector.extract_strided_slice %118 {offsets = [0, 192], sizes = [2, 64], strides = [1, 1]} : vector<2x256xf32> to vector<2x64xf32>
    %cst_46 = arith.constant 5.000000e-01 : f32
    %138 = vector.broadcast %cst_46 : f32 to vector<2x64xf32>
    %139 = arith.mulf %138, %137 : vector<2x64xf32>
    %140 = math.tanh %139 : vector<2x64xf32>
    %cst_47 = arith.constant 5.000000e-01 : f32
    %141 = vector.broadcast %cst_47 : f32 to vector<2x64xf32>
    %142 = arith.mulf %141, %140 : vector<2x64xf32>
    %cst_48 = arith.constant 5.000000e-01 : f32
    %143 = vector.broadcast %cst_48 : f32 to vector<2x64xf32>
    %144 = arith.addf %142, %143 : vector<2x64xf32>
    %145 = arith.mulf %134, %112 : vector<2x64xf32>
    %146 = arith.mulf %126, %136 : vector<2x64xf32>
    %147 = arith.addf %145, %146 : vector<2x64xf32>
    %148 = math.tanh %147 : vector<2x64xf32>
    %149 = arith.mulf %144, %148 : vector<2x64xf32>
    %150 = vector.extract_strided_slice %6 {offsets = [0, 4, 0], sizes = [2, 1, 256], strides = [1, 1, 1]} : vector<2x8x256xf32> to vector<2x1x256xf32>
    %151 = vector.shape_cast %150 : vector<2x1x256xf32> to vector<2x256xf32>
    %cst_49 = arith.constant dense<0.000000e+00> : vector<2x256xf32>
    %152 = tpu.matmul %149, %7, %cst_49 {dimension_numbers = #tpu.dot_dimension_numbers<[1], [0], [0], [1], [0, 0, 1, 1], [], []>} : vector<2x64xf32>, vector<64x256xf32>, vector<2x256xf32> -> vector<2x256xf32>
    %153 = arith.addf %151, %152 : vector<2x256xf32>
    %154 = vector.extract_strided_slice %153 {offsets = [0, 0], sizes = [2, 64], strides = [1, 1]} : vector<2x256xf32> to vector<2x64xf32>
    %cst_50 = arith.constant 5.000000e-01 : f32
    %155 = vector.broadcast %cst_50 : f32 to vector<2x64xf32>
    %156 = arith.mulf %155, %154 : vector<2x64xf32>
    %157 = math.tanh %156 : vector<2x64xf32>
    %cst_51 = arith.constant 5.000000e-01 : f32
    %158 = vector.broadcast %cst_51 : f32 to vector<2x64xf32>
    %159 = arith.mulf %158, %157 : vector<2x64xf32>
    %cst_52 = arith.constant 5.000000e-01 : f32
    %160 = vector.broadcast %cst_52 : f32 to vector<2x64xf32>
    %161 = arith.addf %159, %160 : vector<2x64xf32>
    %162 = vector.extract_strided_slice %153 {offsets = [0, 64], sizes = [2, 64], strides = [1, 1]} : vector<2x256xf32> to vector<2x64xf32>
    %cst_53 = arith.constant 5.000000e-01 : f32
    %163 = vector.broadcast %cst_53 : f32 to vector<2x64xf32>
    %164 = arith.mulf %163, %162 : vector<2x64xf32>
    %165 = math.tanh %164 : vector<2x64xf32>
    %cst_54 = arith.constant 5.000000e-01 : f32
    %166 = vector.broadcast %cst_54 : f32 to vector<2x64xf32>
    %167 = arith.mulf %166, %165 : vector<2x64xf32>
    %cst_55 = arith.constant 5.000000e-01 : f32
    %168 = vector.broadcast %cst_55 : f32 to vector<2x64xf32>
    %169 = arith.addf %167, %168 : vector<2x64xf32>
    %170 = vector.extract_strided_slice %153 {offsets = [0, 128], sizes = [2, 64], strides = [1, 1]} : vector<2x256xf32> to vector<2x64xf32>
    %171 = math.tanh %170 : vector<2x64xf32>
    %172 = vector.extract_strided_slice %153 {offsets = [0, 192], sizes = [2, 64], strides = [1, 1]} : vector<2x256xf32> to vector<2x64xf32>
    %cst_56 = arith.constant 5.000000e-01 : f32
    %173 = vector.broadcast %cst_56 : f32 to vector<2x64xf32>
    %174 = arith.mulf %173, %172 : vector<2x64xf32>
    %175 = math.tanh %174 : vector<2x64xf32>
    %cst_57 = arith.constant 5.000000e-01 : f32
    %176 = vector.broadcast %cst_57 : f32 to vector<2x64xf32>
    %177 = arith.mulf %176, %175 : vector<2x64xf32>
    %cst_58 = arith.constant 5.000000e-01 : f32
    %178 = vector.broadcast %cst_58 : f32 to vector<2x64xf32>
    %179 = arith.addf %177, %178 : vector<2x64xf32>
    %180 = arith.mulf %169, %147 : vector<2x64xf32>
    %181 = arith.mulf %161, %171 : vector<2x64xf32>
    %182 = arith.addf %180, %181 : vector<2x64xf32>
    %183 = math.tanh %182 : vector<2x64xf32>
    %184 = arith.mulf %179, %183 : vector<2x64xf32>
    %185 = vector.extract_strided_slice %6 {offsets = [0, 5, 0], sizes = [2, 1, 256], strides = [1, 1, 1]} : vector<2x8x256xf32> to vector<2x1x256xf32>
    %186 = vector.shape_cast %185 : vector<2x1x256xf32> to vector<2x256xf32>
    %cst_59 = arith.constant dense<0.000000e+00> : vector<2x256xf32>
    %187 = tpu.matmul %184, %7, %cst_59 {dimension_numbers = #tpu.dot_dimension_numbers<[1], [0], [0], [1], [0, 0, 1, 1], [], []>} : vector<2x64xf32>, vector<64x256xf32>, vector<2x256xf32> -> vector<2x256xf32>
    %188 = arith.addf %186, %187 : vector<2x256xf32>
    %189 = vector.extract_strided_slice %188 {offsets = [0, 0], sizes = [2, 64], strides = [1, 1]} : vector<2x256xf32> to vector<2x64xf32>
    %cst_60 = arith.constant 5.000000e-01 : f32
    %190 = vector.broadcast %cst_60 : f32 to vector<2x64xf32>
    %191 = arith.mulf %190, %189 : vector<2x64xf32>
    %192 = math.tanh %191 : vector<2x64xf32>
    %cst_61 = arith.constant 5.000000e-01 : f32
    %193 = vector.broadcast %cst_61 : f32 to vector<2x64xf32>
    %194 = arith.mulf %193, %192 : vector<2x64xf32>
    %cst_62 = arith.constant 5.000000e-01 : f32
    %195 = vector.broadcast %cst_62 : f32 to vector<2x64xf32>
    %196 = arith.addf %194, %195 : vector<2x64xf32>
    %197 = vector.extract_strided_slice %188 {offsets = [0, 64], sizes = [2, 64], strides = [1, 1]} : vector<2x256xf32> to vector<2x64xf32>
    %cst_63 = arith.constant 5.000000e-01 : f32
    %198 = vector.broadcast %cst_63 : f32 to vector<2x64xf32>
    %199 = arith.mulf %198, %197 : vector<2x64xf32>
    %200 = math.tanh %199 : vector<2x64xf32>
    %cst_64 = arith.constant 5.000000e-01 : f32
    %201 = vector.broadcast %cst_64 : f32 to vector<2x64xf32>
    %202 = arith.mulf %201, %200 : vector<2x64xf32>
    %cst_65 = arith.constant 5.000000e-01 : f32
    %203 = vector.broadcast %cst_65 : f32 to vector<2x64xf32>
    %204 = arith.addf %202, %203 : vector<2x64xf32>
    %205 = vector.extract_strided_slice %188 {offsets = [0, 128], sizes = [2, 64], strides = [1, 1]} : vector<2x256xf32> to vector<2x64xf32>
    %206 = math.tanh %205 : vector<2x64xf32>
    %207 = vector.extract_strided_slice %188 {offsets = [0, 192], sizes = [2, 64], strides = [1, 1]} : vector<2x256xf32> to vector<2x64xf32>
    %cst_66 = arith.constant 5.000000e-01 : f32
    %208 = vector.broadcast %cst_66 : f32 to vector<2x64xf32>
    %209 = arith.mulf %208, %207 : vector<2x64xf32>
    %210 = math.tanh %209 : vector<2x64xf32>
    %cst_67 = arith.constant 5.000000e-01 : f32
    %211 = vector.broadcast %cst_67 : f32 to vector<2x64xf32>
    %212 = arith.mulf %211, %210 : vector<2x64xf32>
    %cst_68 = arith.constant 5.000000e-01 : f32
    %213 = vector.broadcast %cst_68 : f32 to vector<2x64xf32>
    %214 = arith.addf %212, %213 : vector<2x64xf32>
    %215 = arith.mulf %204, %182 : vector<2x64xf32>
    %216 = arith.mulf %196, %206 : vector<2x64xf32>
    %217 = arith.addf %215, %216 : vector<2x64xf32>
    %218 = math.tanh %217 : vector<2x64xf32>
    %219 = arith.mulf %214, %218 : vector<2x64xf32>
    %220 = vector.extract_strided_slice %6 {offsets = [0, 6, 0], sizes = [2, 1, 256], strides = [1, 1, 1]} : vector<2x8x256xf32> to vector<2x1x256xf32>
    %221 = vector.shape_cast %220 : vector<2x1x256xf32> to vector<2x256xf32>
    %cst_69 = arith.constant dense<0.000000e+00> : vector<2x256xf32>
    %222 = tpu.matmul %219, %7, %cst_69 {dimension_numbers = #tpu.dot_dimension_numbers<[1], [0], [0], [1], [0, 0, 1, 1], [], []>} : vector<2x64xf32>, vector<64x256xf32>, vector<2x256xf32> -> vector<2x256xf32>
    %223 = arith.addf %221, %222 : vector<2x256xf32>
    %224 = vector.extract_strided_slice %223 {offsets = [0, 0], sizes = [2, 64], strides = [1, 1]} : vector<2x256xf32> to vector<2x64xf32>
    %cst_70 = arith.constant 5.000000e-01 : f32
    %225 = vector.broadcast %cst_70 : f32 to vector<2x64xf32>
    %226 = arith.mulf %225, %224 : vector<2x64xf32>
    %227 = math.tanh %226 : vector<2x64xf32>
    %cst_71 = arith.constant 5.000000e-01 : f32
    %228 = vector.broadcast %cst_71 : f32 to vector<2x64xf32>
    %229 = arith.mulf %228, %227 : vector<2x64xf32>
    %cst_72 = arith.constant 5.000000e-01 : f32
    %230 = vector.broadcast %cst_72 : f32 to vector<2x64xf32>
    %231 = arith.addf %229, %230 : vector<2x64xf32>
    %232 = vector.extract_strided_slice %223 {offsets = [0, 64], sizes = [2, 64], strides = [1, 1]} : vector<2x256xf32> to vector<2x64xf32>
    %cst_73 = arith.constant 5.000000e-01 : f32
    %233 = vector.broadcast %cst_73 : f32 to vector<2x64xf32>
    %234 = arith.mulf %233, %232 : vector<2x64xf32>
    %235 = math.tanh %234 : vector<2x64xf32>
    %cst_74 = arith.constant 5.000000e-01 : f32
    %236 = vector.broadcast %cst_74 : f32 to vector<2x64xf32>
    %237 = arith.mulf %236, %235 : vector<2x64xf32>
    %cst_75 = arith.constant 5.000000e-01 : f32
    %238 = vector.broadcast %cst_75 : f32 to vector<2x64xf32>
    %239 = arith.addf %237, %238 : vector<2x64xf32>
    %240 = vector.extract_strided_slice %223 {offsets = [0, 128], sizes = [2, 64], strides = [1, 1]} : vector<2x256xf32> to vector<2x64xf32>
    %241 = math.tanh %240 : vector<2x64xf32>
    %242 = vector.extract_strided_slice %223 {offsets = [0, 192], sizes = [2, 64], strides = [1, 1]} : vector<2x256xf32> to vector<2x64xf32>
    %cst_76 = arith.constant 5.000000e-01 : f32
    %243 = vector.broadcast %cst_76 : f32 to vector<2x64xf32>
    %244 = arith.mulf %243, %242 : vector<2x64xf32>
    %245 = math.tanh %244 : vector<2x64xf32>
    %cst_77 = arith.constant 5.000000e-01 : f32
    %246 = vector.broadcast %cst_77 : f32 to vector<2x64xf32>
    %247 = arith.mulf %246, %245 : vector<2x64xf32>
    %cst_78 = arith.constant 5.000000e-01 : f32
    %248 = vector.broadcast %cst_78 : f32 to vector<2x64xf32>
    %249 = arith.addf %247, %248 : vector<2x64xf32>
    %250 = arith.mulf %239, %217 : vector<2x64xf32>
    %251 = arith.mulf %231, %241 : vector<2x64xf32>
    %252 = arith.addf %250, %251 : vector<2x64xf32>
    %253 = math.tanh %252 : vector<2x64xf32>
    %254 = arith.mulf %249, %253 : vector<2x64xf32>
    %255 = vector.extract_strided_slice %6 {offsets = [0, 7, 0], sizes = [2, 1, 256], strides = [1, 1, 1]} : vector<2x8x256xf32> to vector<2x1x256xf32>
    %256 = vector.shape_cast %255 : vector<2x1x256xf32> to vector<2x256xf32>
    %cst_79 = arith.constant dense<0.000000e+00> : vector<2x256xf32>
    %257 = tpu.matmul %254, %7, %cst_79 {dimension_numbers = #tpu.dot_dimension_numbers<[1], [0], [0], [1], [0, 0, 1, 1], [], []>} : vector<2x64xf32>, vector<64x256xf32>, vector<2x256xf32> -> vector<2x256xf32>
    %258 = arith.addf %256, %257 : vector<2x256xf32>
    %259 = vector.extract_strided_slice %258 {offsets = [0, 0], sizes = [2, 64], strides = [1, 1]} : vector<2x256xf32> to vector<2x64xf32>
    %cst_80 = arith.constant 5.000000e-01 : f32
    %260 = vector.broadcast %cst_80 : f32 to vector<2x64xf32>
    %261 = arith.mulf %260, %259 : vector<2x64xf32>
    %262 = math.tanh %261 : vector<2x64xf32>
    %cst_81 = arith.constant 5.000000e-01 : f32
    %263 = vector.broadcast %cst_81 : f32 to vector<2x64xf32>
    %264 = arith.mulf %263, %262 : vector<2x64xf32>
    %cst_82 = arith.constant 5.000000e-01 : f32
    %265 = vector.broadcast %cst_82 : f32 to vector<2x64xf32>
    %266 = arith.addf %264, %265 : vector<2x64xf32>
    %267 = vector.extract_strided_slice %258 {offsets = [0, 64], sizes = [2, 64], strides = [1, 1]} : vector<2x256xf32> to vector<2x64xf32>
    %cst_83 = arith.constant 5.000000e-01 : f32
    %268 = vector.broadcast %cst_83 : f32 to vector<2x64xf32>
    %269 = arith.mulf %268, %267 : vector<2x64xf32>
    %270 = math.tanh %269 : vector<2x64xf32>
    %cst_84 = arith.constant 5.000000e-01 : f32
    %271 = vector.broadcast %cst_84 : f32 to vector<2x64xf32>
    %272 = arith.mulf %271, %270 : vector<2x64xf32>
    %cst_85 = arith.constant 5.000000e-01 : f32
    %273 = vector.broadcast %cst_85 : f32 to vector<2x64xf32>
    %274 = arith.addf %272, %273 : vector<2x64xf32>
    %275 = vector.extract_strided_slice %258 {offsets = [0, 128], sizes = [2, 64], strides = [1, 1]} : vector<2x256xf32> to vector<2x64xf32>
    %276 = math.tanh %275 : vector<2x64xf32>
    %277 = vector.extract_strided_slice %258 {offsets = [0, 192], sizes = [2, 64], strides = [1, 1]} : vector<2x256xf32> to vector<2x64xf32>
    %cst_86 = arith.constant 5.000000e-01 : f32
    %278 = vector.broadcast %cst_86 : f32 to vector<2x64xf32>
    %279 = arith.mulf %278, %277 : vector<2x64xf32>
    %280 = math.tanh %279 : vector<2x64xf32>
    %cst_87 = arith.constant 5.000000e-01 : f32
    %281 = vector.broadcast %cst_87 : f32 to vector<2x64xf32>
    %282 = arith.mulf %281, %280 : vector<2x64xf32>
    %cst_88 = arith.constant 5.000000e-01 : f32
    %283 = vector.broadcast %cst_88 : f32 to vector<2x64xf32>
    %284 = arith.addf %282, %283 : vector<2x64xf32>
    %285 = arith.mulf %274, %252 : vector<2x64xf32>
    %286 = arith.mulf %266, %276 : vector<2x64xf32>
    %287 = arith.addf %285, %286 : vector<2x64xf32>
    %288 = math.tanh %287 : vector<2x64xf32>
    %289 = arith.mulf %284, %288 : vector<2x64xf32>
    %c0_89 = arith.constant 0 : index
    %c0_90 = arith.constant 0 : index
    %290 = vector.load %arg4[%c0_89, %c0_90] : memref<64x1xf32, #tpu.memory_space<vmem>>, vector<64x1xf32>
    %cst_91 = arith.constant dense<0.000000e+00> : vector<2x1xf32>
    %291 = tpu.matmul %289, %290, %cst_91 {dimension_numbers = #tpu.dot_dimension_numbers<[1], [0], [0], [1], [0, 0, 1, 1], [], []>} : vector<2x64xf32>, vector<64x1xf32>, vector<2x1xf32> -> vector<2x1xf32>
    %c0_92 = arith.constant 0 : index
    %c0_93 = arith.constant 0 : index
    %292 = vector.load %arg5[%c0_92, %c0_93] : memref<1x1xf32, #tpu.memory_space<vmem>>, vector<1x1xf32>
    %293 = vector.broadcast %292 : vector<1x1xf32> to vector<2x1xf32>
    %294 = arith.addf %291, %293 : vector<2x1xf32>
    %c0_94 = arith.constant 0 : index
    %c0_95 = arith.constant 0 : index
    %295 = vector.load %arg6[%c0_94, %c0_95] : memref<2x1xf32, #tpu.memory_space<vmem>>, vector<2x1xf32>
    tpu.vector_store %arg6[%c0_94, %c0_95], %294 {strides = array<i32>} : memref<2x1xf32, #tpu.memory_space<vmem>>, vector<2x1xf32>,
    return
  }
}

</mosaic_0001>

<llo_original>
// kernel: tpu_custom_call.1
$region0: #{tpu_custom_call.1}
  #allocation0 [shape = 'u32[]', space=smem, size = 0x4, offset = 0x4, fixed_abs, tag = 'smem constant byte address 0x4 - core index']
  #allocation1 [shape = 'u32[72,128]{1,0:T(1,128)}', space=vmem, size = 0x9000, scoped, tag = 'internal scratch']
  #allocation2 [shape = 'f32[1,1]{1,0:T(1,128)S(1)}', space=vmem, size = 0x200, scoped, tag = 'scoped memory for tpu_custom_call.1']
  %s0 = inlined_call_operand.vmem [shape: f32[16,4], index: 0, kind: input, shape index: {}]
  %s1 = inlined_call_operand.vmem [shape: f32[4,256], index: 1, kind: input, shape index: {}]
  %s2 = inlined_call_operand.hbm [shape: f32[64,256], index: 2, kind: input, shape index: {}]
  %s3 = inlined_call_operand.vmem [shape: f32[1,256], index: 3, kind: input, shape index: {}]
  %s4 = inlined_call_operand.vmem [shape: f32[64,1], index: 4, kind: input, shape index: {}]
  %s5 = inlined_call_operand.<no memory space> [shape: f32[1,1], index: 5, kind: input, shape index: {}]
  %s6 = inlined_call_operand.vmem [shape: f32[2,1], index: 6, kind: output, shape index: {}]
  %s7 = sld [smem:[#allocation0]]
  $region38: #{tpu_custom_call.1} parent=0
    _
  %s9 = ssub.s32 1, %s7
  %s10 = scalar_select 0, %s9, %s7
  %v11 = vstv %s5
  %12 = vst [vmem:[#allocation2] sm:$0x1] %v11
  $region1: #{tpu_custom_call.1} parent=0
    #allocation3 [shape = 'u8[65536]{0}', space=vmem, size = 0x10000, scoped, tag = 'input window, operand 2, single buffered']
    #allocation4 [shape = 's32[1]{0}', space=sflag, size = 0x4, scoped, tag = 'scoped memory for tpu_custom_call.1']
    %13 = vsyncpa [#allocation4], 0
    // Predicated region
    $region2: #{tpu_custom_call.1} parent=1 // pred_check
      _
    $region3: #{tpu_custom_call.1} parent=1 // pred_check_branch
      %15 = sbr.rel (0) target = $region5
    $region4: #{tpu_custom_call.1} parent=1 // pred_region
      _
    $region5: #{tpu_custom_call.1} parent=1 // pred_fallthru
      _
    // Predicated region
    $region6: #{tpu_custom_call.1} parent=1 // pred_check
      _
    $region7: #{tpu_custom_call.1} parent=1 // pred_check_branch
      %17 = sbr.rel (0) target = $region9
    $region8: #{tpu_custom_call.1} parent=1 // pred_region
      _
    $region9: #{tpu_custom_call.1} parent=1 // pred_fallthru
      _
    // Predicated region
    $region10: #{tpu_custom_call.1} parent=1 // pred_check
      _
    $region11: #{tpu_custom_call.1} parent=1 // pred_check_branch
      %19 = sbr.rel (0) target = $region13
    $region12: #{tpu_custom_call.1} parent=1 // pred_region
      %21 = vsyncadd [#allocation4], 0
      %s22 = sshll.u32 %s2, 4
      %s23 = int_to_ptr.hbm [resolvable:$true] %s22
      %s24 = sshll.u32 [#allocation3], 4
      %s25 = int_to_ptr.vmem [resolvable:$true] %s24
      %30 = dma.hbm_to_vmem [thread:$0]  %s23, 2048, %s25, [#allocation4], 256, 256, 16
    $region13: #{tpu_custom_call.1} parent=1 // pred_fallthru
      _
    // Predicated region
    $region14: #{tpu_custom_call.1} parent=1 // pred_check
      _
    $region15: #{tpu_custom_call.1} parent=1 // pred_check_branch
      %32 = sbr.rel (0) target = $region17
    $region16: #{tpu_custom_call.1} parent=1 // pred_region
      _
    $region17: #{tpu_custom_call.1} parent=1 // pred_fallthru
      _
    // Predicated region
    $region18: #{tpu_custom_call.1} parent=1 // pred_check
      _
    $region19: #{tpu_custom_call.1} parent=1 // pred_check_branch
      %34 = sbr.rel (0) target = $region21
    $region20: #{tpu_custom_call.1} parent=1 // pred_region
      _
    $region21: #{tpu_custom_call.1} parent=1 // pred_fallthru
      _
    // Predicated region
    $region22: #{tpu_custom_call.1} parent=1 // pred_check
      _
    $region23: #{tpu_custom_call.1} parent=1 // pred_check_branch
      %36 = sbr.rel (0) target = $region25
    $region24: #{tpu_custom_call.1} parent=1 // pred_region
      _
    $region25: #{tpu_custom_call.1} parent=1 // pred_fallthru
      _
    // Predicated region
    $region26: #{tpu_custom_call.1} parent=1 // pred_check
      _
    $region27: #{tpu_custom_call.1} parent=1 // pred_check_branch
      %38 = sbr.rel (0) target = $region29
    $region28: #{tpu_custom_call.1} parent=1 // pred_region
      %40 = dma.done [#allocation4], 2048
    $region29: #{tpu_custom_call.1} parent=1 // pred_fallthru
      _
    %v41 = vld [vmem:[%s0] sm:$0xff]
    %v42 = vld [vmem:[%s0 + $0x8] sm:$0xff]
    %v43 = vld [vmem:[%s1] sm:$0xff]
    %v44 = vld [vmem:[%s3] sm:$0x3]
    %v46 = vperm.slane %v44, 0
    %v47 = vperm.slane %v44, 1
    %51 = vst [vmem:[#allocation1] ss:$2 sm:$0xff] %v43
    %v52 = vld.sshfl [vmem:[#allocation1] sm:$0xff pattern:$0x75316420]
    %v53 = vld.sshfl [vmem:[#allocation1 + $0x8] sm:$0xff pattern:$0x75316420]
    %vm54 = vcmask 31744
    %v56 = vsel %vm54, %v41, 0
    %v59 = vsel %vm54, %v42, 0
    %vm61 = vcmask 1043456
    %v62 = vsel %vm61, %v52, 0
    %v64 = vsel %vm61, %v53, 0
    %66 = vmatpush.msra.mxu0 0.0
    %67 = vmatpush.msra.mxu0 0.0
    %68 = vmatpush.msra.mxu0 0.0
    %69 = vmatpush.msra.mxu0 0.0
    %70 = vmatpush.msra.mxu0 0.0
    %71 = vmatpush.msra.mxu0 0.0
    %72 = vmatpush.msra.mxu0 0.0
    %73 = vmatpush.msra.mxu0 0.0
    %74 = vmatpush.msra.mxu0 0.0
    %75 = vmatpush.msra.mxu0 0.0
    %76 = vmatpush.msra.mxu0 0.0
    %77 = vmatpush.msra.mxu0 0.0
    %78 = vmatpush.msra.mxu0 0.0
    %79 = vmatpush.msra.mxu0 0.0
    %80 = vmatpush.msra.mxu0 0.0
    %81 = vmatpush.msra.mxu0 %v62
    %82 = vmatmul.f32.gmra.mxu0 %v56
    %v83 = vpop.f32.mrf.mxu0
    %v84 = vadd.f32 %v46, %v83
    %85 = vmatmul.f32.gmra.mxu0 %v59
    %v86 = vpop.f32.mrf.mxu0
    %v87 = vadd.f32 %v46, %v86
    %88 = vdwg.mxu0
    %89 = vmatpush.msra.mxu0 0.0
    %90 = vmatpush.msra.mxu0 0.0
    %91 = vmatpush.msra.mxu0 0.0
    %92 = vmatpush.msra.mxu0 0.0
    %93 = vmatpush.msra.mxu0 0.0
    %94 = vmatpush.msra.mxu0 0.0
    %95 = vmatpush.msra.mxu0 0.0
    %96 = vmatpush.msra.mxu0 0.0
    %97 = vmatpush.msra.mxu0 0.0
    %98 = vmatpush.msra.mxu0 0.0
    %99 = vmatpush.msra.mxu0 0.0
    %100 = vmatpush.msra.mxu0 0.0
    %101 = vmatpush.msra.mxu0 0.0
    %102 = vmatpush.msra.mxu0 0.0
    %103 = vmatpush.msra.mxu0 0.0
    %104 = vmatpush.msra.mxu0 %v64
    %105 = vmatmul.f32.gmra.mxu0 %v56
    %v106 = vpop.f32.mrf.mxu0
    %v107 = vadd.f32 %v47, %v106
    %108 = vmatmul.f32.gmra.mxu0 %v59
    %v109 = vpop.f32.mrf.mxu0
    %v110 = vadd.f32 %v47, %v109
    %111 = vdwg.mxu0
    %v112 = vld [vmem:[#allocation3] sm:$0xff]
    %v113 = vld [vmem:[#allocation3 + $0x8] sm:$0xff]
    %v114 = vld [vmem:[#allocation3 + $0x10] sm:$0xff]
    %v115 = vld [vmem:[#allocation3 + $0x18] sm:$0xff]
    %v116 = vld [vmem:[#allocation3 + $0x20] sm:$0xff]
    %v117 = vld [vmem:[#allocation3 + $0x28] sm:$0xff]
    %v118 = vld [vmem:[#allocation3 + $0x30] sm:$0xff]
    %v119 = vld [vmem:[#allocation3 + $0x38] sm:$0xff]
    %v120 = vld [vmem:[#allocation3 + $0x40] sm:$0xff]
    %v121 = vld [vmem:[#allocation3 + $0x48] sm:$0xff]
    %v122 = vld [vmem:[#allocation3 + $0x50] sm:$0xff]
    %v123 = vld [vmem:[#allocation3 + $0x58] sm:$0xff]
    %v124 = vld [vmem:[#allocation3 + $0x60] sm:$0xff]
    %v125 = vld [vmem:[#allocation3 + $0x68] sm:$0xff]
    %v126 = vld [vmem:[#allocation3 + $0x70] sm:$0xff]
    %v127 = vld [vmem:[#allocation3 + $0x78] sm:$0xff]
    %vm128 = vcmask 523264
    %v130 = vsel %vm128, 0.0, 0
    %132 = vmatpush.msra.mxu0 0.0
    %133 = vmatpush.msra.mxu0 0.0
    %134 = vmatpush.msra.mxu0 0.0
    %135 = vmatpush.msra.mxu0 0.0
    %136 = vmatpush.msra.mxu0 0.0
    %137 = vmatpush.msra.mxu0 0.0
    %138 = vmatpush.msra.mxu0 0.0
    %139 = vmatpush.msra.mxu0 0.0
    %140 = vmatpush.msra.mxu0 %v126
    %141 = vmatpush.msra.mxu0 %v124
    %142 = vmatpush.msra.mxu0 %v122
    %143 = vmatpush.msra.mxu0 %v120
    %144 = vmatpush.msra.mxu0 %v118
    %145 = vmatpush.msra.mxu0 %v116
    %146 = vmatpush.msra.mxu0 %v114
    %147 = vmatpush.msra.mxu0 %v112
    %148 = vmatmul.f32.gmra.mxu0 %v130
    %v149 = vpop.f32.mrf.mxu0
    %v150 = vadd.f32 0.0, %v149
    %151 = vdwg.mxu0
    %152 = vmatpush.msra.mxu0 0.0
    %153 = vmatpush.msra.mxu0 0.0
    %154 = vmatpush.msra.mxu0 0.0
    %155 = vmatpush.msra.mxu0 0.0
    %156 = vmatpush.msra.mxu0 0.0
    %157 = vmatpush.msra.mxu0 0.0
    %158 = vmatpush.msra.mxu0 0.0
    %159 = vmatpush.msra.mxu0 0.0
    %160 = vmatpush.msra.mxu0 %v127
    %161 = vmatpush.msra.mxu0 %v125
    %162 = vmatpush.msra.mxu0 %v123
    %163 = vmatpush.msra.mxu0 %v121
    %164 = vmatpush.msra.mxu0 %v119
    %165 = vmatpush.msra.mxu0 %v117
    %166 = vmatpush.msra.mxu0 %v115
    %167 = vmatpush.msra.mxu0 %v113
    %168 = vmatmul.f32.gmra.mxu0 %v130
    %v169 = vpop.f32.mrf.mxu0
    %v170 = vadd.f32 0.0, %v169
    %171 = vdwg.mxu0
    %v174 = vrot.slane %v150, 1
    %v175 = vrot.slane %v170, 1
    %v180 = vadd.f32 %v84, %v150
    %v181 = vadd.f32 %v107, %v170
    %v182 = vadd.f32 %v87, %v174
    %v183 = vadd.f32 %v110, %v175
    %v184 = vmul.f32 %v180, 0.5
    %v185 = vmul.f32 %v182, 0.5
    %v186 = vtanh.pop %v184
    %v187 = vtanh.pop %v185
    %v188 = vmul.f32 %v186, 0.5
    %v189 = vmul.f32 %v187, 0.5
    %v190 = vadd.f32 %v188, 0.5
    %v191 = vadd.f32 %v189, 0.5
    %v192 = vtanh.pop %v181
    %v193 = vtanh.pop %v183
    %v194 = vmul.f32 %v181, 0.5
    %v195 = vmul.f32 %v183, 0.5
    %v196 = vtanh.pop %v194
    %v197 = vtanh.pop %v195
    %v198 = vmul.f32 %v196, 0.5
    %v199 = vmul.f32 %v197, 0.5
    %v200 = vadd.f32 %v198, 0.5
    %v201 = vadd.f32 %v199, 0.5
    %v202 = vmul.f32 %v190, 0.0
    %v203 = vmul.f32 %v191, 0.0
    %v204 = vmul.f32 %v190, %v192
    %v205 = vmul.f32 %v191, %v193
    %208 = vrot.lane.b32.xlu0 %v204, 64
    %v209 = vpop.permute.xlu0 %208
    %210 = vrot.lane.b32.xlu0 %v205, 64
    %v211 = vpop.permute.xlu0 %210
    %v214 = vadd.f32 %v202, %v209
    %v215 = vadd.f32 %v203, %v211
    %v216 = vtanh.pop %v214
    %v217 = vtanh.pop %v215
    %v218 = vmul.f32 %v200, %v216
    %v219 = vmul.f32 %v201, %v217
    %v222 = vrot.slane %v219, 7
    %vm223 = vcmask 1041409
    %v224 = vsel %vm223, %v222, %v218
    %225 = vrot.lane.b32.xlu0 %v224, 64
    %v226 = vpop.permute.xlu0 %225
    %v227 = vsel %vm128, %v226, 0
    %229 = vmatpush.msra.mxu0 0.0
    %230 = vmatpush.msra.mxu0 0.0
    %231 = vmatpush.msra.mxu0 0.0
    %232 = vmatpush.msra.mxu0 0.0
    %233 = vmatpush.msra.mxu0 0.0
    %234 = vmatpush.msra.mxu0 0.0
    %235 = vmatpush.msra.mxu0 0.0
    %236 = vmatpush.msra.mxu0 0.0
    %237 = vmatpush.msra.mxu0 %v126
    %238 = vmatpush.msra.mxu0 %v124
    %239 = vmatpush.msra.mxu0 %v122
    %240 = vmatpush.msra.mxu0 %v120
    %241 = vmatpush.msra.mxu0 %v118
    %242 = vmatpush.msra.mxu0 %v116
    %243 = vmatpush.msra.mxu0 %v114
    %244 = vmatpush.msra.mxu0 %v112
    %245 = vmatmul.f32.gmra.mxu0 %v227
    %v246 = vpop.f32.mrf.mxu0
    %v247 = vadd.f32 0.0, %v246
    %248 = vdwg.mxu0
    %249 = vmatpush.msra.mxu0 0.0
    %250 = vmatpush.msra.mxu0 0.0
    %251 = vmatpush.msra.mxu0 0.0
    %252 = vmatpush.msra.mxu0 0.0
    %253 = vmatpush.msra.mxu0 0.0
    %254 = vmatpush.msra.mxu0 0.0
    %255 = vmatpush.msra.mxu0 0.0
    %256 = vmatpush.msra.mxu0 0.0
    %257 = vmatpush.msra.mxu0 %v127
    %258 = vmatpush.msra.mxu0 %v125
    %259 = vmatpush.msra.mxu0 %v123
    %260 = vmatpush.msra.mxu0 %v121
    %261 = vmatpush.msra.mxu0 %v119
    %262 = vmatpush.msra.mxu0 %v117
    %263 = vmatpush.msra.mxu0 %v115
    %264 = vmatpush.msra.mxu0 %v113
    %265 = vmatmul.f32.gmra.mxu0 %v227
    %v266 = vpop.f32.mrf.mxu0
    %v267 = vadd.f32 0.0, %v266
    %268 = vdwg.mxu0
    %v271 = vrot.slane %v247, 7
    %v272 = vrot.slane %v267, 7
    %v277 = vadd.f32 %v84, %v271
    %v278 = vadd.f32 %v107, %v272
    %v279 = vadd.f32 %v87, %v247
    %v280 = vadd.f32 %v110, %v267
    %v281 = vmul.f32 %v277, 0.5
    %v282 = vmul.f32 %v279, 0.5
    %v283 = vtanh.pop %v281
    %v284 = vtanh.pop %v282
    %v285 = vmul.f32 %v283, 0.5
    %v286 = vmul.f32 %v284, 0.5
    %v287 = vadd.f32 %v285, 0.5
    %v288 = vadd.f32 %v286, 0.5
    %v289 = vtanh.pop %v278
    %v290 = vtanh.pop %v280
    %v291 = vmul.f32 %v278, 0.5
    %v292 = vmul.f32 %v280, 0.5
    %v293 = vtanh.pop %v291
    %v294 = vtanh.pop %v292
    %v295 = vmul.f32 %v293, 0.5
    %v296 = vmul.f32 %v294, 0.5
    %v297 = vadd.f32 %v295, 0.5
    %v298 = vadd.f32 %v296, 0.5
    %v301 = vrot.slane %v214, 7
    %v302 = vrot.slane %v215, 7
    %v305 = vmul.f32 %v287, %v301
    %v306 = vmul.f32 %v288, %v302
    %v307 = vmul.f32 %v287, %v289
    %v308 = vmul.f32 %v288, %v290
    %311 = vrot.lane.b32.xlu0 %v307, 64
    %v312 = vpop.permute.xlu0 %311
    %313 = vrot.lane.b32.xlu0 %v308, 64
    %v314 = vpop.permute.xlu0 %313
    %v317 = vadd.f32 %v305, %v312
    %v318 = vadd.f32 %v306, %v314
    %v319 = vtanh.pop %v317
    %v320 = vtanh.pop %v318
    %v321 = vmul.f32 %v297, %v319
    %v322 = vmul.f32 %v298, %v320
    %v325 = vrot.slane %v321, 1
    %v326 = vsel %vm223, %v322, %v325
    %327 = vrot.lane.b32.xlu0 %v326, 64
    %v328 = vpop.permute.xlu0 %327
    %v329 = vsel %vm128, %v328, 0
    %331 = vmatpush.msra.mxu0 0.0
    %332 = vmatpush.msra.mxu0 0.0
    %333 = vmatpush.msra.mxu0 0.0
    %334 = vmatpush.msra.mxu0 0.0
    %335 = vmatpush.msra.mxu0 0.0
    %336 = vmatpush.msra.mxu0 0.0
    %337 = vmatpush.msra.mxu0 0.0
    %338 = vmatpush.msra.mxu0 0.0
    %339 = vmatpush.msra.mxu0 %v126
    %340 = vmatpush.msra.mxu0 %v124
    %341 = vmatpush.msra.mxu0 %v122
    %342 = vmatpush.msra.mxu0 %v120
    %343 = vmatpush.msra.mxu0 %v118
    %344 = vmatpush.msra.mxu0 %v116
    %345 = vmatpush.msra.mxu0 %v114
    %346 = vmatpush.msra.mxu0 %v112
    %347 = vmatmul.f32.gmra.mxu0 %v329
    %v348 = vpop.f32.mrf.mxu0
    %v349 = vadd.f32 0.0, %v348
    %350 = vdwg.mxu0
    %351 = vmatpush.msra.mxu0 0.0
    %352 = vmatpush.msra.mxu0 0.0
    %353 = vmatpush.msra.mxu0 0.0
    %354 = vmatpush.msra.mxu0 0.0
    %355 = vmatpush.msra.mxu0 0.0
    %356 = vmatpush.msra.mxu0 0.0
    %357 = vmatpush.msra.mxu0 0.0
    %358 = vmatpush.msra.mxu0 0.0
    %359 = vmatpush.msra.mxu0 %v127
    %360 = vmatpush.msra.mxu0 %v125
    %361 = vmatpush.msra.mxu0 %v123
    %362 = vmatpush.msra.mxu0 %v121
    %363 = vmatpush.msra.mxu0 %v119
    %364 = vmatpush.msra.mxu0 %v117
    %365 = vmatpush.msra.mxu0 %v115
    %366 = vmatpush.msra.mxu0 %v113
    %367 = vmatmul.f32.gmra.mxu0 %v329
    %v368 = vpop.f32.mrf.mxu0
    %v369 = vadd.f32 0.0, %v368
    %370 = vdwg.mxu0
    %v373 = vrot.slane %v349, 6
    %v374 = vrot.slane %v369, 6
    %v375 = vrot.slane %v349, 7
    %v376 = vrot.slane %v369, 7
    %v381 = vadd.f32 %v84, %v373
    %v382 = vadd.f32 %v107, %v374
    %v383 = vadd.f32 %v87, %v375
    %v384 = vadd.f32 %v110, %v376
    %v385 = vmul.f32 %v381, 0.5
    %v386 = vmul.f32 %v383, 0.5
    %v387 = vtanh.pop %v385
    %v388 = vtanh.pop %v386
    %v389 = vmul.f32 %v387, 0.5
    %v390 = vmul.f32 %v388, 0.5
    %v391 = vadd.f32 %v389, 0.5
    %v392 = vadd.f32 %v390, 0.5
    %v393 = vtanh.pop %v382
    %v394 = vtanh.pop %v384
    %v395 = vmul.f32 %v382, 0.5
    %v396 = vmul.f32 %v384, 0.5
    %v397 = vtanh.pop %v395
    %v398 = vtanh.pop %v396
    %v399 = vmul.f32 %v397, 0.5
    %v400 = vmul.f32 %v398, 0.5
    %v401 = vadd.f32 %v399, 0.5
    %v402 = vadd.f32 %v400, 0.5
    %v405 = vrot.slane %v317, 7
    %v406 = vrot.slane %v318, 7
    %v409 = vmul.f32 %v391, %v405
    %v410 = vmul.f32 %v392, %v406
    %v411 = vmul.f32 %v391, %v393
    %v412 = vmul.f32 %v392, %v394
    %415 = vrot.lane.b32.xlu0 %v411, 64
    %v416 = vpop.permute.xlu0 %415
    %417 = vrot.lane.b32.xlu0 %v412, 64
    %v418 = vpop.permute.xlu0 %417
    %v421 = vadd.f32 %v409, %v416
    %v422 = vadd.f32 %v410, %v418
    %v423 = vtanh.pop %v421
    %v424 = vtanh.pop %v422
    %v425 = vmul.f32 %v401, %v423
    %v426 = vmul.f32 %v402, %v424
    %v429 = vrot.slane %v425, 2
    %v430 = vrot.slane %v426, 1
    %v431 = vsel %vm223, %v430, %v429
    %432 = vrot.lane.b32.xlu0 %v431, 64
    %v433 = vpop.permute.xlu0 %432
    %v434 = vsel %vm128, %v433, 0
    %436 = vmatpush.msra.mxu0 0.0
    %437 = vmatpush.msra.mxu0 0.0
    %438 = vmatpush.msra.mxu0 0.0
    %439 = vmatpush.msra.mxu0 0.0
    %440 = vmatpush.msra.mxu0 0.0
    %441 = vmatpush.msra.mxu0 0.0
    %442 = vmatpush.msra.mxu0 0.0
    %443 = vmatpush.msra.mxu0 0.0
    %444 = vmatpush.msra.mxu0 %v126
    %445 = vmatpush.msra.mxu0 %v124
    %446 = vmatpush.msra.mxu0 %v122
    %447 = vmatpush.msra.mxu0 %v120
    %448 = vmatpush.msra.mxu0 %v118
    %449 = vmatpush.msra.mxu0 %v116
    %450 = vmatpush.msra.mxu0 %v114
    %451 = vmatpush.msra.mxu0 %v112
    %452 = vmatmul.f32.gmra.mxu0 %v434
    %v453 = vpop.f32.mrf.mxu0
    %v454 = vadd.f32 0.0, %v453
    %455 = vdwg.mxu0
    %456 = vmatpush.msra.mxu0 0.0
    %457 = vmatpush.msra.mxu0 0.0
    %458 = vmatpush.msra.mxu0 0.0
    %459 = vmatpush.msra.mxu0 0.0
    %460 = vmatpush.msra.mxu0 0.0
    %461 = vmatpush.msra.mxu0 0.0
    %462 = vmatpush.msra.mxu0 0.0
    %463 = vmatpush.msra.mxu0 0.0
    %464 = vmatpush.msra.mxu0 %v127
    %465 = vmatpush.msra.mxu0 %v125
    %466 = vmatpush.msra.mxu0 %v123
    %467 = vmatpush.msra.mxu0 %v121
    %468 = vmatpush.msra.mxu0 %v119
    %469 = vmatpush.msra.mxu0 %v117
    %470 = vmatpush.msra.mxu0 %v115
    %471 = vmatpush.msra.mxu0 %v113
    %472 = vmatmul.f32.gmra.mxu0 %v434
    %v473 = vpop.f32.mrf.mxu0
    %v474 = vadd.f32 0.0, %v473
    %475 = vdwg.mxu0
    %v478 = vrot.slane %v454, 5
    %v479 = vrot.slane %v474, 5
    %v480 = vrot.slane %v454, 6
    %v481 = vrot.slane %v474, 6
    %v486 = vadd.f32 %v84, %v478
    %v487 = vadd.f32 %v107, %v479
    %v488 = vadd.f32 %v87, %v480
    %v489 = vadd.f32 %v110, %v481
    %v490 = vmul.f32 %v486, 0.5
    %v491 = vmul.f32 %v488, 0.5
    %v492 = vtanh.pop %v490
    %v493 = vtanh.pop %v491
    %v494 = vmul.f32 %v492, 0.5
    %v495 = vmul.f32 %v493, 0.5
    %v496 = vadd.f32 %v494, 0.5
    %v497 = vadd.f32 %v495, 0.5
    %v498 = vtanh.pop %v487
    %v499 = vtanh.pop %v489
    %v500 = vmul.f32 %v487, 0.5
    %v501 = vmul.f32 %v489, 0.5
    %v502 = vtanh.pop %v500
    %v503 = vtanh.pop %v501
    %v504 = vmul.f32 %v502, 0.5
    %v505 = vmul.f32 %v503, 0.5
    %v506 = vadd.f32 %v504, 0.5
    %v507 = vadd.f32 %v505, 0.5
    %v510 = vrot.slane %v421, 7
    %v511 = vrot.slane %v422, 7
    %v514 = vmul.f32 %v496, %v510
    %v515 = vmul.f32 %v497, %v511
    %v516 = vmul.f32 %v496, %v498
    %v517 = vmul.f32 %v497, %v499
    %520 = vrot.lane.b32.xlu0 %v516, 64
    %v521 = vpop.permute.xlu0 %520
    %522 = vrot.lane.b32.xlu0 %v517, 64
    %v523 = vpop.permute.xlu0 %522
    %v526 = vadd.f32 %v514, %v521
    %v527 = vadd.f32 %v515, %v523
    %v528 = vtanh.pop %v526
    %v529 = vtanh.pop %v527
    %v530 = vmul.f32 %v506, %v528
    %v531 = vmul.f32 %v507, %v529
    %v534 = vrot.slane %v530, 3
    %v535 = vrot.slane %v531, 2
    %v536 = vsel %vm223, %v535, %v534
    %537 = vrot.lane.b32.xlu0 %v536, 64
    %v538 = vpop.permute.xlu0 %537
    %v539 = vsel %vm128, %v538, 0
    %541 = vmatpush.msra.mxu0 0.0
    %542 = vmatpush.msra.mxu0 0.0
    %543 = vmatpush.msra.mxu0 0.0
    %544 = vmatpush.msra.mxu0 0.0
    %545 = vmatpush.msra.mxu0 0.0
    %546 = vmatpush.msra.mxu0 0.0
    %547 = vmatpush.msra.mxu0 0.0
    %548 = vmatpush.msra.mxu0 0.0
    %549 = vmatpush.msra.mxu0 %v126
    %550 = vmatpush.msra.mxu0 %v124
    %551 = vmatpush.msra.mxu0 %v122
    %552 = vmatpush.msra.mxu0 %v120
    %553 = vmatpush.msra.mxu0 %v118
    %554 = vmatpush.msra.mxu0 %v116
    %555 = vmatpush.msra.mxu0 %v114
    %556 = vmatpush.msra.mxu0 %v112
    %557 = vmatmul.f32.gmra.mxu0 %v539
    %v558 = vpop.f32.mrf.mxu0
    %v559 = vadd.f32 0.0, %v558
    %560 = vdwg.mxu0
    %561 = vmatpush.msra.mxu0 0.0
    %562 = vmatpush.msra.mxu0 0.0
    %563 = vmatpush.msra.mxu0 0.0
    %564 = vmatpush.msra.mxu0 0.0
    %565 = vmatpush.msra.mxu0 0.0
    %566 = vmatpush.msra.mxu0 0.0
    %567 = vmatpush.msra.mxu0 0.0
    %568 = vmatpush.msra.mxu0 0.0
    %569 = vmatpush.msra.mxu0 %v127
    %570 = vmatpush.msra.mxu0 %v125
    %571 = vmatpush.msra.mxu0 %v123
    %572 = vmatpush.msra.mxu0 %v121
    %573 = vmatpush.msra.mxu0 %v119
    %574 = vmatpush.msra.mxu0 %v117
    %575 = vmatpush.msra.mxu0 %v115
    %576 = vmatpush.msra.mxu0 %v113
    %577 = vmatmul.f32.gmra.mxu0 %v539
    %v578 = vpop.f32.mrf.mxu0
    %v579 = vadd.f32 0.0, %v578
    %580 = vdwg.mxu0
    %v583 = vrot.slane %v559, 4
    %v584 = vrot.slane %v579, 4
    %v585 = vrot.slane %v559, 5
    %v586 = vrot.slane %v579, 5
    %v591 = vadd.f32 %v84, %v583
    %v592 = vadd.f32 %v107, %v584
    %v593 = vadd.f32 %v87, %v585
    %v594 = vadd.f32 %v110, %v586
    %v595 = vmul.f32 %v591, 0.5
    %v596 = vmul.f32 %v593, 0.5
    %v597 = vtanh.pop %v595
    %v598 = vtanh.pop %v596
    %v599 = vmul.f32 %v597, 0.5
    %v600 = vmul.f32 %v598, 0.5
    %v601 = vadd.f32 %v599, 0.5
    %v602 = vadd.f32 %v600, 0.5
    %v603 = vtanh.pop %v592
    %v604 = vtanh.pop %v594
    %v605 = vmul.f32 %v592, 0.5
    %v606 = vmul.f32 %v594, 0.5
    %v607 = vtanh.pop %v605
    %v608 = vtanh.pop %v606
    %v609 = vmul.f32 %v607, 0.5
    %v610 = vmul.f32 %v608, 0.5
    %v611 = vadd.f32 %v609, 0.5
    %v612 = vadd.f32 %v610, 0.5
    %v615 = vrot.slane %v526, 7
    %v616 = vrot.slane %v527, 7
    %v619 = vmul.f32 %v601, %v615
    %v620 = vmul.f32 %v602, %v616
    %v621 = vmul.f32 %v601, %v603
    %v622 = vmul.f32 %v602, %v604
    %625 = vrot.lane.b32.xlu0 %v621, 64
    %v626 = vpop.permute.xlu0 %625
    %627 = vrot.lane.b32.xlu0 %v622, 64
    %v628 = vpop.permute.xlu0 %627
    %v631 = vadd.f32 %v619, %v626
    %v632 = vadd.f32 %v620, %v628
    %v633 = vtanh.pop %v631
    %v634 = vtanh.pop %v632
    %v635 = vmul.f32 %v611, %v633
    %v636 = vmul.f32 %v612, %v634
    %v639 = vrot.slane %v635, 4
    %v640 = vrot.slane %v636, 3
    %v641 = vsel %vm223, %v640, %v639
    %642 = vrot.lane.b32.xlu0 %v641, 64
    %v643 = vpop.permute.xlu0 %642
    %v644 = vsel %vm128, %v643, 0
    %646 = vmatpush.msra.mxu0 0.0
    %647 = vmatpush.msra.mxu0 0.0
    %648 = vmatpush.msra.mxu0 0.0
    %649 = vmatpush.msra.mxu0 0.0
    %650 = vmatpush.msra.mxu0 0.0
    %651 = vmatpush.msra.mxu0 0.0
    %652 = vmatpush.msra.mxu0 0.0
    %653 = vmatpush.msra.mxu0 0.0
    %654 = vmatpush.msra.mxu0 %v126
    %655 = vmatpush.msra.mxu0 %v124
    %656 = vmatpush.msra.mxu0 %v122
    %657 = vmatpush.msra.mxu0 %v120
    %658 = vmatpush.msra.mxu0 %v118
    %659 = vmatpush.msra.mxu0 %v116
    %660 = vmatpush.msra.mxu0 %v114
    %661 = vmatpush.msra.mxu0 %v112
    %662 = vmatmul.f32.gmra.mxu0 %v644
    %v663 = vpop.f32.mrf.mxu0
    %v664 = vadd.f32 0.0, %v663
    %665 = vdwg.mxu0
    %666 = vmatpush.msra.mxu0 0.0
    %667 = vmatpush.msra.mxu0 0.0
    %668 = vmatpush.msra.mxu0 0.0
    %669 = vmatpush.msra.mxu0 0.0
    %670 = vmatpush.msra.mxu0 0.0
    %671 = vmatpush.msra.mxu0 0.0
    %672 = vmatpush.msra.mxu0 0.0
    %673 = vmatpush.msra.mxu0 0.0
    %674 = vmatpush.msra.mxu0 %v127
    %675 = vmatpush.msra.mxu0 %v125
    %676 = vmatpush.msra.mxu0 %v123
    %677 = vmatpush.msra.mxu0 %v121
    %678 = vmatpush.msra.mxu0 %v119
    %679 = vmatpush.msra.mxu0 %v117
    %680 = vmatpush.msra.mxu0 %v115
    %681 = vmatpush.msra.mxu0 %v113
    %682 = vmatmul.f32.gmra.mxu0 %v644
    %v683 = vpop.f32.mrf.mxu0
    %v684 = vadd.f32 0.0, %v683
    %685 = vdwg.mxu0
    %v688 = vrot.slane %v664, 3
    %v689 = vrot.slane %v684, 3
    %v690 = vrot.slane %v664, 4
    %v691 = vrot.slane %v684, 4
    %v696 = vadd.f32 %v84, %v688
    %v697 = vadd.f32 %v107, %v689
    %v698 = vadd.f32 %v87, %v690
    %v699 = vadd.f32 %v110, %v691
    %v700 = vmul.f32 %v696, 0.5
    %v701 = vmul.f32 %v698, 0.5
    %v702 = vtanh.pop %v700
    %v703 = vtanh.pop %v701
    %v704 = vmul.f32 %v702, 0.5
    %v705 = vmul.f32 %v703, 0.5
    %v706 = vadd.f32 %v704, 0.5
    %v707 = vadd.f32 %v705, 0.5
    %v708 = vtanh.pop %v697
    %v709 = vtanh.pop %v699
    %v710 = vmul.f32 %v697, 0.5
    %v711 = vmul.f32 %v699, 0.5
    %v712 = vtanh.pop %v710
    %v713 = vtanh.pop %v711
    %v714 = vmul.f32 %v712, 0.5
    %v715 = vmul.f32 %v713, 0.5
    %v716 = vadd.f32 %v714, 0.5
    %v717 = vadd.f32 %v715, 0.5
    %v720 = vrot.slane %v631, 7
    %v721 = vrot.slane %v632, 7
    %v724 = vmul.f32 %v706, %v720
    %v725 = vmul.f32 %v707, %v721
    %v726 = vmul.f32 %v706, %v708
    %v727 = vmul.f32 %v707, %v709
    %730 = vrot.lane.b32.xlu0 %v726, 64
    %v731 = vpop.permute.xlu0 %730
    %732 = vrot.lane.b32.xlu0 %v727, 64
    %v733 = vpop.permute.xlu0 %732
    %v736 = vadd.f32 %v724, %v731
    %v737 = vadd.f32 %v725, %v733
    %v738 = vtanh.pop %v736
    %v739 = vtanh.pop %v737
    %v740 = vmul.f32 %v716, %v738
    %v741 = vmul.f32 %v717, %v739
    %v744 = vrot.slane %v740, 5
    %v745 = vrot.slane %v741, 4
    %v746 = vsel %vm223, %v745, %v744
    %747 = vrot.lane.b32.xlu0 %v746, 64
    %v748 = vpop.permute.xlu0 %747
    %v749 = vsel %vm128, %v748, 0
    %751 = vmatpush.msra.mxu0 0.0
    %752 = vmatpush.msra.mxu0 0.0
    %753 = vmatpush.msra.mxu0 0.0
    %754 = vmatpush.msra.mxu0 0.0
    %755 = vmatpush.msra.mxu0 0.0
    %756 = vmatpush.msra.mxu0 0.0
    %757 = vmatpush.msra.mxu0 0.0
    %758 = vmatpush.msra.mxu0 0.0
    %759 = vmatpush.msra.mxu0 %v126
    %760 = vmatpush.msra.mxu0 %v124
    %761 = vmatpush.msra.mxu0 %v122
    %762 = vmatpush.msra.mxu0 %v120
    %763 = vmatpush.msra.mxu0 %v118
    %764 = vmatpush.msra.mxu0 %v116
    %765 = vmatpush.msra.mxu0 %v114
    %766 = vmatpush.msra.mxu0 %v112
    %767 = vmatmul.f32.gmra.mxu0 %v749
    %v768 = vpop.f32.mrf.mxu0
    %v769 = vadd.f32 0.0, %v768
    %770 = vdwg.mxu0
    %771 = vmatpush.msra.mxu0 0.0
    %772 = vmatpush.msra.mxu0 0.0
    %773 = vmatpush.msra.mxu0 0.0
    %774 = vmatpush.msra.mxu0 0.0
    %775 = vmatpush.msra.mxu0 0.0
    %776 = vmatpush.msra.mxu0 0.0
    %777 = vmatpush.msra.mxu0 0.0
    %778 = vmatpush.msra.mxu0 0.0
    %779 = vmatpush.msra.mxu0 %v127
    %780 = vmatpush.msra.mxu0 %v125
    %781 = vmatpush.msra.mxu0 %v123
    %782 = vmatpush.msra.mxu0 %v121
    %783 = vmatpush.msra.mxu0 %v119
    %784 = vmatpush.msra.mxu0 %v117
    %785 = vmatpush.msra.mxu0 %v115
    %786 = vmatpush.msra.mxu0 %v113
    %787 = vmatmul.f32.gmra.mxu0 %v749
    %v788 = vpop.f32.mrf.mxu0
    %v789 = vadd.f32 0.0, %v788
    %790 = vdwg.mxu0
    %v793 = vrot.slane %v769, 2
    %v794 = vrot.slane %v789, 2
    %v795 = vrot.slane %v769, 3
    %v796 = vrot.slane %v789, 3
    %v801 = vadd.f32 %v84, %v793
    %v802 = vadd.f32 %v107, %v794
    %v803 = vadd.f32 %v87, %v795
    %v804 = vadd.f32 %v110, %v796
    %v805 = vmul.f32 %v801, 0.5
    %v806 = vmul.f32 %v803, 0.5
    %v807 = vtanh.pop %v805
    %v808 = vtanh.pop %v806
    %v809 = vmul.f32 %v807, 0.5
    %v810 = vmul.f32 %v808, 0.5
    %v811 = vadd.f32 %v809, 0.5
    %v812 = vadd.f32 %v810, 0.5
    %v813 = vtanh.pop %v802
    %v814 = vtanh.pop %v804
    %v815 = vmul.f32 %v802, 0.5
    %v816 = vmul.f32 %v804, 0.5
    %v817 = vtanh.pop %v815
    %v818 = vtanh.pop %v816
    %v819 = vmul.f32 %v817, 0.5
    %v820 = vmul.f32 %v818, 0.5
    %v821 = vadd.f32 %v819, 0.5
    %v822 = vadd.f32 %v820, 0.5
    %v825 = vrot.slane %v736, 7
    %v826 = vrot.slane %v737, 7
    %v829 = vmul.f32 %v811, %v825
    %v830 = vmul.f32 %v812, %v826
    %v831 = vmul.f32 %v811, %v813
    %v832 = vmul.f32 %v812, %v814
    %835 = vrot.lane.b32.xlu0 %v831, 64
    %v836 = vpop.permute.xlu0 %835
    %837 = vrot.lane.b32.xlu0 %v832, 64
    %v838 = vpop.permute.xlu0 %837
    %v841 = vadd.f32 %v829, %v836
    %v842 = vadd.f32 %v830, %v838
    %v843 = vtanh.pop %v841
    %v844 = vtanh.pop %v842
    %v845 = vmul.f32 %v821, %v843
    %v846 = vmul.f32 %v822, %v844
    %v849 = vrot.slane %v845, 6
    %v850 = vrot.slane %v846, 5
    %v851 = vsel %vm223, %v850, %v849
    %852 = vrot.lane.b32.xlu0 %v851, 64
    %v853 = vpop.permute.xlu0 %852
    %v854 = vsel %vm128, %v853, 0
    %856 = vmatpush.msra.mxu0 0.0
    %857 = vmatpush.msra.mxu0 0.0
    %858 = vmatpush.msra.mxu0 0.0
    %859 = vmatpush.msra.mxu0 0.0
    %860 = vmatpush.msra.mxu0 0.0
    %861 = vmatpush.msra.mxu0 0.0
    %862 = vmatpush.msra.mxu0 0.0
    %863 = vmatpush.msra.mxu0 0.0
    %864 = vmatpush.msra.mxu0 %v126
    %865 = vmatpush.msra.mxu0 %v124
    %866 = vmatpush.msra.mxu0 %v122
    %867 = vmatpush.msra.mxu0 %v120
    %868 = vmatpush.msra.mxu0 %v118
    %869 = vmatpush.msra.mxu0 %v116
    %870 = vmatpush.msra.mxu0 %v114
    %871 = vmatpush.msra.mxu0 %v112
    %872 = vmatmul.f32.gmra.mxu0 %v854
    %v873 = vpop.f32.mrf.mxu0
    %v874 = vadd.f32 0.0, %v873
    %875 = vdwg.mxu0
    %876 = vmatpush.msra.mxu0 0.0
    %877 = vmatpush.msra.mxu0 0.0
    %878 = vmatpush.msra.mxu0 0.0
    %879 = vmatpush.msra.mxu0 0.0
    %880 = vmatpush.msra.mxu0 0.0
    %881 = vmatpush.msra.mxu0 0.0
    %882 = vmatpush.msra.mxu0 0.0
    %883 = vmatpush.msra.mxu0 0.0
    %884 = vmatpush.msra.mxu0 %v127
    %885 = vmatpush.msra.mxu0 %v125
    %886 = vmatpush.msra.mxu0 %v123
    %887 = vmatpush.msra.mxu0 %v121
    %888 = vmatpush.msra.mxu0 %v119
    %889 = vmatpush.msra.mxu0 %v117
    %890 = vmatpush.msra.mxu0 %v115
    %891 = vmatpush.msra.mxu0 %v113
    %892 = vmatmul.f32.gmra.mxu0 %v854
    %v893 = vpop.f32.mrf.mxu0
    %v894 = vadd.f32 0.0, %v893
    %895 = vdwg.mxu0
    %v898 = vrot.slane %v874, 1
    %v899 = vrot.slane %v894, 1
    %v900 = vrot.slane %v874, 2
    %v901 = vrot.slane %v894, 2
    %v906 = vadd.f32 %v84, %v898
    %v907 = vadd.f32 %v107, %v899
    %v908 = vadd.f32 %v87, %v900
    %v909 = vadd.f32 %v110, %v901
    %v910 = vmul.f32 %v906, 0.5
    %v911 = vmul.f32 %v908, 0.5
    %v912 = vtanh.pop %v910
    %v913 = vtanh.pop %v911
    %v914 = vmul.f32 %v912, 0.5
    %v915 = vmul.f32 %v913, 0.5
    %v916 = vadd.f32 %v914, 0.5
    %v917 = vadd.f32 %v915, 0.5
    %v918 = vtanh.pop %v907
    %v919 = vtanh.pop %v909
    %v920 = vmul.f32 %v907, 0.5
    %v921 = vmul.f32 %v909, 0.5
    %v922 = vtanh.pop %v920
    %v923 = vtanh.pop %v921
    %v924 = vmul.f32 %v922, 0.5
    %v925 = vmul.f32 %v923, 0.5
    %v926 = vadd.f32 %v924, 0.5
    %v927 = vadd.f32 %v925, 0.5
    %v930 = vrot.slane %v841, 7
    %v931 = vrot.slane %v842, 7
    %v934 = vmul.f32 %v916, %v930
    %v935 = vmul.f32 %v917, %v931
    %v936 = vmul.f32 %v916, %v918
    %v937 = vmul.f32 %v917, %v919
    %940 = vrot.lane.b32.xlu0 %v936, 64
    %v941 = vpop.permute.xlu0 %940
    %942 = vrot.lane.b32.xlu0 %v937, 64
    %v943 = vpop.permute.xlu0 %942
    %v946 = vadd.f32 %v934, %v941
    %v947 = vadd.f32 %v935, %v943
    %v948 = vtanh.pop %v946
    %v949 = vtanh.pop %v947
    %v950 = vmul.f32 %v926, %v948
    %v951 = vmul.f32 %v927, %v949
    %v952 = vld [vmem:[%s4] sm:$0xff]
    %v953 = vld [vmem:[%s4 + $0x8] sm:$0xff]
    %v954 = vld [vmem:[%s4 + $0x10] sm:$0xff]
    %v955 = vld [vmem:[%s4 + $0x18] sm:$0xff]
    %v956 = vld [vmem:[%s4 + $0x20] sm:$0xff]
    %v957 = vld [vmem:[%s4 + $0x28] sm:$0xff]
    %v958 = vld [vmem:[%s4 + $0x30] sm:$0xff]
    %v959 = vld [vmem:[%s4 + $0x38] sm:$0xff]
    %v960 = vld [vmem:[#allocation2] sm:$0x1]
    %v962 = vperm.slane %v960, 0
    %v966 = vrot.slane %v950, 7
    %v967 = vrot.slane %v951, 6
    %v968 = vsel %vm223, %v967, %v966
    %969 = vrot.lane.b32.xlu0 %v968, 64
    %v970 = vpop.permute.xlu0 %969
    %v971 = vsel %vm128, %v970, 0
    %973 = vmatpush.msra.mxu0 0.0
    %974 = vmatpush.msra.mxu0 0.0
    %975 = vmatpush.msra.mxu0 0.0
    %976 = vmatpush.msra.mxu0 0.0
    %977 = vmatpush.msra.mxu0 0.0
    %978 = vmatpush.msra.mxu0 0.0
    %979 = vmatpush.msra.mxu0 0.0
    %980 = vmatpush.msra.mxu0 0.0
    %981 = vmatpush.msra.mxu0 %v959
    %982 = vmatpush.msra.mxu0 %v958
    %983 = vmatpush.msra.mxu0 %v957
    %984 = vmatpush.msra.mxu0 %v956
    %985 = vmatpush.msra.mxu0 %v955
    %986 = vmatpush.msra.mxu0 %v954
    %987 = vmatpush.msra.mxu0 %v953
    %988 = vmatpush.msra.mxu0 %v952
    %989 = vmatmul.f32.gmra.mxu0 %v971
    %v990 = vpop.f32.mrf.mxu0
    %v991 = vadd.f32 %v962, %v990
    %992 = vdwg.mxu0
    %vm993 = vcmask 1024
    %994 = vst.msk [vmem:[%s6] sm:$0x3] %vm993, %v991
    // Predicated region
    $region30: #{tpu_custom_call.1} parent=1 // pred_check
      _
    $region31: #{tpu_custom_call.1} parent=1 // pred_check_branch
      %996 = sbr.rel (0) target = $region33
    $region32: #{tpu_custom_call.1} parent=1 // pred_region
      _
    $region33: #{tpu_custom_call.1} parent=1 // pred_fallthru
      _
    // Predicated region
    $region34: #{tpu_custom_call.1} parent=1 // pred_check
      _
    $region35: #{tpu_custom_call.1} parent=1 // pred_check_branch
      %998 = sbr.rel (0) target = $region37
    $region36: #{tpu_custom_call.1} parent=1 // pred_region
      _
    $region37: #{tpu_custom_call.1} parent=1 // pred_fallthru
      _
    %999 = vsyncpa [#allocation4], 1

</llo_original>
